<compile_context>
chip_gen: v5e
topology: v5e:2x2
jax: 0.10.0
libtpu: 0.0.40
codegen_flags: <defaults>
</compile_context>

<pallas_src>
import jax
import jax.numpy as jnp
from jax.experimental import pallas as pl
from jax.experimental.pallas import tpu as pltpu


def _gather_kernel(idx_ref, table_ref, out_ref):
    # idx_ref:   (TM, 1)   int32 block of lookup indices.
    # table_ref: (NMp, Ep) full (padded) embedding table, resident in VMEM.
    # out_ref:   (TM, Ep)  gathered rows.
    tm = out_ref.shape[0]
    nm = table_ref.shape[0]

    idx = idx_ref[...]                                              # (TM, 1)
    module_ids = jax.lax.broadcasted_iota(jnp.int32, (tm, nm), 1)   # (TM, NM)
    one_hot = (idx == module_ids).astype(table_ref.dtype)           # (TM, NM)

    out_ref[...] = jnp.dot(
        one_hot, table_ref[...], preferred_element_type=jnp.float32
    ).astype(out_ref.dtype)


def _round_up(x, m):
    return ((x + m - 1) // m) * m


def simple_librarian_forward(embedding, inputs, block_rows=512):
    """embedding: (num_modules, E) float; inputs: int array, any shape.

    Returns embedding[inputs] with shape inputs.shape + (E,).
    """
    num_modules, emb_size = embedding.shape

    idx_flat = jnp.asarray(inputs, dtype=jnp.int32).reshape(-1)
    n = idx_flat.shape[0]

    # Pad the table to sublane/lane-aligned dims so MXU operands and the
    # output tile are (8, 128)-tile friendly for any (num_modules, emb_size).
    nm_pad = _round_up(num_modules, 8)
    e_pad = _round_up(emb_size, 128)
    table = embedding
    if (nm_pad, e_pad) != (num_modules, emb_size):
        table = jnp.pad(table, ((0, nm_pad - num_modules), (0, e_pad - emb_size)))

    # Tile height: multiple of 8 (f32 sublane), clamped so tiny problems run
    # in a single grid step.
    tm = min(block_rows, _round_up(n, 8))
    tm = max(8, _round_up(tm, 8))

    n_pad = pl.cdiv(n, tm) * tm
    if n_pad != n:
        # Pad with index 0; padded rows are sliced off below.
        idx_flat = jnp.pad(idx_flat, (0, n_pad - n))
    idx_col = idx_flat.reshape(n_pad, 1)

    grid_spec = pltpu.PrefetchScalarGridSpec(
        num_scalar_prefetch=0,
        grid=(n_pad // tm,),
        in_specs=[
            # Block of TM indices for this grid step.
            pl.BlockSpec((tm, 1), lambda i: (i, 0)),
            # Whole table, constant block index -> stays resident in VMEM.
            pl.BlockSpec((nm_pad, e_pad), lambda i: (0, 0)),
        ],
        out_specs=pl.BlockSpec((tm, e_pad), lambda i: (i, 0)),
    )

    out_flat = pl.pallas_call(
        _gather_kernel,
        out_shape=jax.ShapeDtypeStruct((n_pad, e_pad), embedding.dtype),
        grid_spec=grid_spec,
        compiler_params=pltpu.CompilerParams(
            # Independent output tiles -> shard grid across TCs on megacore.
            dimension_semantics=("parallel",),
        ),
    )(idx_col, table)

    return out_flat[:n, :emb_size].reshape(inputs.shape + (emb_size,))


if __name__ == "__main__":
    num_modules = 8
    embedding_size = 128  # lane-width-aligned

    key = jax.random.PRNGKey(0)
    k_emb, k_idx = jax.random.split(key)

    # Deterministic "torch.randn" analogue for the embedding table.
    embedding = jax.random.normal(
        k_emb, (num_modules, embedding_size), dtype=jnp.float32
    )
    # Small batch of lookup indices, shape (2, 8).
    inputs = jax.random.randint(
        k_idx, (2, 8), minval=0, maxval=num_modules, dtype=jnp.int32
    )

    out = simple_librarian_forward(embedding, inputs)
    out = jax.block_until_ready(out)

    # Correctness check vs plain JAX gather (== torch embedding[inputs]).
    ref = embedding[inputs]
    assert out.shape == inputs.shape + (embedding_size,)
    assert jnp.allclose(out, ref), "mismatch vs reference gather"

    # Larger, non-multiple-of-TM shape covering padding/tiling.
    inputs_big = jax.random.randint(
        jax.random.PRNGKey(1), (3, 7, 19), minval=0, maxval=num_modules,
        dtype=jnp.int32
    )
    out_big = jax.block_until_ready(
        simple_librarian_forward(embedding, inputs_big)
    )
    assert out_big.shape == inputs_big.shape + (embedding_size,)
    assert jnp.allclose(out_big, embedding[inputs_big]), "mismatch (big case)"

    # Non-aligned table dims (rows not multiple of 8, cols not multiple of 128).
    emb_odd = jax.random.normal(jax.random.PRNGKey(2), (5, 96), dtype=jnp.float32)
    idx_odd = jax.random.randint(
        jax.random.PRNGKey(3), (4, 3), minval=0, maxval=5, dtype=jnp.int32
    )
    out_odd = jax.block_until_ready(simple_librarian_forward(emb_odd, idx_odd))
    assert out_odd.shape == idx_odd.shape + (96,)
    assert jnp.allclose(out_odd, emb_odd[idx_odd]), "mismatch (odd dims)"

    print("KERNEL_OK")
</pallas_src>

<mosaic_0001>
module attributes {stable_mosaic.version = 11 : i64} {
  func.func @_gather_kernel(%arg0: i32, %arg1: memref<16x1xi32, #tpu.memory_space<vmem>>, %arg2: memref<8x128xf32, #tpu.memory_space<vmem>>, %arg3: memref<16x128xf32, #tpu.memory_space<vmem>>) attributes {dimension_semantics = [#tpu.dimension_semantics<parallel>], iteration_bounds = array<i64: 1>, scalar_prefetch = 0 : i64, scratch_operands = 0 : i64, tpu.core_type = #tpu.core_type<tc>, window_params = [{transform_indices = @transform_0, window_bounds = array<i64: 16, 1>}, {pipeline_mode = #tpu.pipeline_mode<synchronous>, transform_indices = @transform_1, window_bounds = array<i64: 8, 128>}, {transform_indices = @transform_2, window_bounds = array<i64: 16, 128>}]} {
    %c0 = arith.constant 0 : index
    %c0_0 = arith.constant 0 : index
    %0 = vector.load %arg1[%c0, %c0_0] : memref<16x1xi32, #tpu.memory_space<vmem>>, vector<16x1xi32>
    %1 = tpu.iota {dimensions = array<i32: 1>} : vector<16x8xi32>
    %2 = vector.broadcast %0 : vector<16x1xi32> to vector<16x8xi32>
    %3 = arith.cmpi eq, %2, %1 : vector<16x8xi32>
    %4 = arith.extui %3 : vector<16x8xi1> to vector<16x8xi32>
    %5 = arith.sitofp %4 : vector<16x8xi32> to vector<16x8xf32>
    %c0_1 = arith.constant 0 : index
    %c0_2 = arith.constant 0 : index
    %6 = vector.load %arg2[%c0_1, %c0_2] : memref<8x128xf32, #tpu.memory_space<vmem>>, vector<8x128xf32>
    %cst = arith.constant dense<0.000000e+00> : vector<16x128xf32>
    %7 = tpu.matmul %5, %6, %cst {dimension_numbers = #tpu.dot_dimension_numbers<[1], [0], [0], [1], [0, 0, 1, 1], [], []>} : vector<16x8xf32>, vector<8x128xf32>, vector<16x128xf32> -> vector<16x128xf32>
    %c0_3 = arith.constant 0 : index
    %c0_4 = arith.constant 0 : index
    %8 = vector.load %arg3[%c0_3, %c0_4] : memref<16x128xf32, #tpu.memory_space<vmem>>, vector<16x128xf32>
    tpu.vector_store %arg3[%c0_3, %c0_4], %7 {strides = array<i32>} : memref<16x128xf32, #tpu.memory_space<vmem>>, vector<16x128xf32>,
    return
  }
  func.func @transform_0(%arg0: i32) -> (i32, i32) {
    %c0_i32 = arith.constant 0 : i32
    %c0_i32_0 = arith.constant 0 : i32
    return %arg0, %c0_i32 : i32, i32
  }
  func.func @transform_1(%arg0: i32) -> (i32, i32) {
    %c0_i32 = arith.constant 0 : i32
    %c0_i32_0 = arith.constant 0 : i32
    %c0_i32_1 = arith.constant 0 : i32
    return %c0_i32, %c0_i32_0 : i32, i32
  }
  func.func @transform_2(%arg0: i32) -> (i32, i32) {
    %c0_i32 = arith.constant 0 : i32
    %c0_i32_0 = arith.constant 0 : i32
    return %arg0, %c0_i32 : i32, i32
  }
}

</mosaic_0001>

<llo_original>
// kernel: tpu_custom_call.1
$region0: #{tpu_custom_call.1}
  #allocation0 [shape = 'u32[]', space=smem, size = 0x4, offset = 0x4, fixed_abs, tag = 'smem constant byte address 0x4 - core index']
  #allocation1 [shape = 'u32[72,128]{1,0:T(1,128)}', space=vmem, size = 0x9000, scoped, tag = 'internal scratch']
  %s0 = inlined_call_operand.vmem [shape: s32[16,1], index: 0, kind: input, shape index: {}]
  %s1 = inlined_call_operand.vmem [shape: f32[8,128], index: 1, kind: input, shape index: {}]
  %s2 = inlined_call_operand.hbm [shape: f32[16,128], index: 2, kind: output, shape index: {}]
  %s3 = sld [smem:[#allocation0]]
  $region18: #{tpu_custom_call.1} parent=0
    _
  %s5 = ssub.s32 1, %s3
  %s6 = scalar_select 0, %s5, %s3
  $region1: #{tpu_custom_call.1} parent=0
    #allocation2 [shape = 'u8[8192]{0}', space=vmem, size = 0x2000, scoped, tag = 'output window, operand 0, single buffered']
    #allocation3 [shape = 's32[1]{0}', space=sflag, size = 0x4, scoped, tag = 'scoped memory for tpu_custom_call.1']
    %7 = vsyncpa [#allocation3], 0
    // Predicated region
    $region2: #{tpu_custom_call.1} parent=1 // pred_check
      _
    $region3: #{tpu_custom_call.1} parent=1 // pred_check_branch
      %9 = sbr.rel (0) target = $region5
    $region4: #{tpu_custom_call.1} parent=1 // pred_region
      _
    $region5: #{tpu_custom_call.1} parent=1 // pred_fallthru
      _
    // Predicated region
    $region6: #{tpu_custom_call.1} parent=1 // pred_check
      _
    $region7: #{tpu_custom_call.1} parent=1 // pred_check_branch
      %11 = sbr.rel (0) target = $region9
    $region8: #{tpu_custom_call.1} parent=1 // pred_region
      _
    $region9: #{tpu_custom_call.1} parent=1 // pred_fallthru
      _
    %v12 = vld [vmem:[%s0] sm:$0xff]
    %v13 = vld [vmem:[%s0 + $0x8] sm:$0xff]
    %v14 = vlaneseq
    %v15 = vand.u32 %v14, 127
    %16 = vset.pattern.permute.xlu0 0
    %17 = vperm.xlu0 %16, %v12
    %v18 = vpop.permute.xlu0 %17
    %19 = vset.pattern.permute.xlu0 0
    %20 = vperm.xlu0 %19, %v13
    %v21 = vpop.permute.xlu0 %20
    %vm22 = vcmp.eq.s32.totalorder %v18, %v15
    %vm23 = vcmp.eq.s32.totalorder %v21, %v15
    %v24 = vsel %vm22, 1, 0
    %v25 = vsel %vm23, 1, 0
    %v26 = vcvt.s32.f32 %v24
    %v27 = vcvt.s32.f32 %v25
    %v28 = vld [vmem:[%s1] sm:$0xff]
    %vm29 = vcmask 64512
    %v31 = vsel %vm29, %v26, 0
    %v34 = vsel %vm29, %v27, 0
    %36 = vmatpush.msra.mxu0 0.0
    %37 = vmatpush.msra.mxu0 0.0
    %38 = vmatpush.msra.mxu0 0.0
    %39 = vmatpush.msra.mxu0 0.0
    %40 = vmatpush.msra.mxu0 0.0
    %41 = vmatpush.msra.mxu0 0.0
    %42 = vmatpush.msra.mxu0 0.0
    %43 = vmatpush.msra.mxu0 0.0
    %44 = vmatpush.msra.mxu0 0.0
    %45 = vmatpush.msra.mxu0 0.0
    %46 = vmatpush.msra.mxu0 0.0
    %47 = vmatpush.msra.mxu0 0.0
    %48 = vmatpush.msra.mxu0 0.0
    %49 = vmatpush.msra.mxu0 0.0
    %50 = vmatpush.msra.mxu0 0.0
    %51 = vmatpush.msra.mxu0 %v28
    %52 = vmatmul.f32.gmra.mxu0 %v31
    %v53 = vpop.f32.mrf.mxu0
    %v54 = vadd.f32 0.0, %v53
    %55 = vmatmul.f32.gmra.mxu0 %v34
    %v56 = vpop.f32.mrf.mxu0
    %v57 = vadd.f32 0.0, %v56
    %58 = vdwg.mxu0
    %59 = vst [vmem:[#allocation2] sm:$0xff] %v54
    %60 = vst [vmem:[#allocation2 + $0x8] sm:$0xff] %v57
    // Predicated region
    $region10: #{tpu_custom_call.1} parent=1 // pred_check
      _
    $region11: #{tpu_custom_call.1} parent=1 // pred_check_branch
      %62 = sbr.rel (0) target = $region13
    $region12: #{tpu_custom_call.1} parent=1 // pred_region
      %64 = vsyncadd [#allocation3], 0
      %s65 = sshll.u32 [#allocation2], 4
      %s66 = int_to_ptr.vmem [resolvable:$true] %s65
      %s67 = sshll.u32 %s2, 4
      %s68 = int_to_ptr.hbm [resolvable:$true] %s67
      %73 = dma.vmem_to_hbm [thread:$0]  %s66, 256, %s68, [#allocation3], 128, 128, 8
    $region13: #{tpu_custom_call.1} parent=1 // pred_fallthru
      _
    // Predicated region
    $region14: #{tpu_custom_call.1} parent=1 // pred_check
      _
    $region15: #{tpu_custom_call.1} parent=1 // pred_check_branch
      %75 = sbr.rel (0) target = $region17
    $region16: #{tpu_custom_call.1} parent=1 // pred_region
      %77 = dma.done [#allocation3], 256
    $region17: #{tpu_custom_call.1} parent=1 // pred_fallthru
      _
    %78 = vsyncpa [#allocation3], 1

</llo_original>
